<compile_context>
chip_gen: v7x
topology: tpu7x:2x2x1
jax: 0.10.0
libtpu: 0.0.40
codegen_flags: <defaults>
</compile_context>

<pallas_src>
import jax
import jax.numpy as jnp
from jax.experimental import pallas as pl
from jax.experimental.pallas import tpu as pltpu


def mlp_kernel(xT_ref, w1T_ref, b1_ref, w2T_ref, b2_ref, oT_ref):
    # xT_ref : (F, TN)   lane axis = batch tile (lane-dense)
    # w1T_ref: (H, F)    resident across grid steps
    # b1_ref : (H, 1)    resident; broadcasts over lanes on the VPU
    # w2T_ref: (O, H)    resident
    # b2_ref : (O, 1)    resident
    # oT_ref : (O, TN)   lane-dense output -> unmasked full-width stores
    hT = jnp.dot(w1T_ref[...], xT_ref[...], preferred_element_type=jnp.float32)
    hT = jnp.maximum(hT + b1_ref[...], 0.0)          # fused bias + ReLU
    yT = jnp.dot(w2T_ref[...], hT, preferred_element_type=jnp.float32)
    oT_ref[...] = (yT + b2_ref[...]).astype(oT_ref.dtype)


def _round_up(a, m):
    return ((a + m - 1) // m) * m


def net_forward(x, w1, b1, w2, b2, *, block_n=1024):
    """x: (N, F) float32; w1: (F, H); b1: (H,); w2: (H, O); b2: (O,)."""
    n, f = x.shape
    h = w1.shape[1]
    o = w2.shape[1]

    # Transpose the problem so batch maps to the lane axis.
    xT = x.T                       # (F, N)
    w1T = w1.T                     # (H, F)
    w2T = w2.T                     # (O, H)
    b1c = b1.reshape(h, 1)         # (H, 1) -> broadcast over lanes
    b2c = b2.reshape(o, 1)         # (O, 1)

    # Lane tile for the batch axis: multiple of 128, capped at block_n.
    tn = min(block_n, _round_up(n, 128))
    n_pad = _round_up(n, tn)
    if n_pad != n:
        xT = jnp.pad(xT, ((0, 0), (0, n_pad - n)))

    grid = (n_pad // tn,)

    yT = pl.pallas_call(
        mlp_kernel,
        out_shape=jax.ShapeDtypeStruct((o, n_pad), x.dtype),
        grid=grid,
        in_specs=[
            pl.BlockSpec((f, tn), lambda i: (0, i)),   # x^T: tiled over batch
            pl.BlockSpec((h, f), lambda i: (0, 0)),    # W1^T: resident
            pl.BlockSpec((h, 1), lambda i: (0, 0)),    # b1:   resident
            pl.BlockSpec((o, h), lambda i: (0, 0)),    # W2^T: resident
            pl.BlockSpec((o, 1), lambda i: (0, 0)),    # b2:   resident
        ],
        out_specs=pl.BlockSpec((o, tn), lambda i: (0, i)),
        compiler_params=pltpu.CompilerParams(
            dimension_semantics=("parallel",),         # megacore shard on v7x
            vmem_limit_bytes=64 * 1024 * 1024,
        ),
    )(xT, w1T, b1c, w2T, b2c)

    return yT[:, :n].T             # back to (N, O)


def init_params(key, input_feature, num_hidden, outputs):
    """Deterministic init mimicking nn.Linear default (uniform +/-1/sqrt(fan_in))."""
    k1, k2, k3, k4 = jax.random.split(key, 4)
    bound1 = 1.0 / jnp.sqrt(input_feature)
    bound2 = 1.0 / jnp.sqrt(num_hidden)
    w1 = jax.random.uniform(k1, (input_feature, num_hidden), jnp.float32,
                            -bound1, bound1)
    b1 = jax.random.uniform(k2, (num_hidden,), jnp.float32, -bound1, bound1)
    w2 = jax.random.uniform(k3, (num_hidden, outputs), jnp.float32,
                            -bound2, bound2)
    b2 = jax.random.uniform(k4, (outputs,), jnp.float32, -bound2, bound2)
    return w1, b1, w2, b2


if __name__ == "__main__":
    # Shapes consistent with Net(input_feature, num_hidden, outputs).
    # Batch large enough to exercise the tiled, pipelined, parallel grid
    # (grid = 2048 / 1024 = 2 steps -> one per TensorCore on v7x) while
    # staying small overall.
    batch = 2048
    input_feature = 8
    num_hidden = 32
    outputs = 4

    key = jax.random.PRNGKey(0)
    kx, kp = jax.random.split(key)
    x = jax.random.normal(kx, (batch, input_feature), jnp.float32)
    w1, b1, w2, b2 = init_params(kp, input_feature, num_hidden, outputs)

    y = net_forward(x, w1, b1, w2, b2)
    jax.block_until_ready(y)

    # Pure-JAX reference check of the forward pass semantics.
    h_ref = jnp.maximum(x @ w1 + b1, 0.0)
    y_ref = h_ref @ w2 + b2
    assert y.shape == (batch, outputs)
    assert jnp.allclose(y, y_ref, atol=1e-5, rtol=1e-5)

    print("KERNEL_OK")
</pallas_src>

<mosaic_0001>
module attributes {stable_mosaic.version = 11 : i64} {
  func.func @mlp_kernel(%arg0: i32, %arg1: memref<8x1024xf32, #tpu.memory_space<vmem>>, %arg2: memref<32x8xf32, #tpu.memory_space<vmem>>, %arg3: memref<32x1xf32, #tpu.memory_space<vmem>>, %arg4: memref<4x32xf32, #tpu.memory_space<vmem>>, %arg5: memref<4x1xf32, #tpu.memory_space<vmem>>, %arg6: memref<4x1024xf32, #tpu.memory_space<vmem>>) attributes {dimension_semantics = [#tpu.dimension_semantics<parallel>], iteration_bounds = array<i64: 2>, scalar_prefetch = 0 : i64, scratch_operands = 0 : i64, tpu.core_type = #tpu.core_type<tc>, window_params = [{transform_indices = @transform_0, window_bounds = array<i64: 8, 1024>}, {pipeline_mode = #tpu.pipeline_mode<synchronous>, transform_indices = @transform_1, window_bounds = array<i64: 32, 8>}, {pipeline_mode = #tpu.pipeline_mode<synchronous>, transform_indices = @transform_2, window_bounds = array<i64: 32, 1>}, {pipeline_mode = #tpu.pipeline_mode<synchronous>, transform_indices = @transform_3, window_bounds = array<i64: 4, 32>}, {pipeline_mode = #tpu.pipeline_mode<synchronous>, transform_indices = @transform_4, window_bounds = array<i64: 4, 1>}, {transform_indices = @transform_5, window_bounds = array<i64: 4, 1024>}]} {
    %c0 = arith.constant 0 : index
    %c0_0 = arith.constant 0 : index
    %0 = vector.load %arg2[%c0, %c0_0] : memref<32x8xf32, #tpu.memory_space<vmem>>, vector<32x8xf32>
    %c0_1 = arith.constant 0 : index
    %c0_2 = arith.constant 0 : index
    %1 = vector.load %arg1[%c0_1, %c0_2] : memref<8x1024xf32, #tpu.memory_space<vmem>>, vector<8x1024xf32>
    %cst = arith.constant dense<0.000000e+00> : vector<32x1024xf32>
    %2 = tpu.matmul %0, %1, %cst {dimension_numbers = #tpu.dot_dimension_numbers<[1], [0], [0], [1], [0, 0, 1, 1], [], []>} : vector<32x8xf32>, vector<8x1024xf32>, vector<32x1024xf32> -> vector<32x1024xf32>
    %c0_3 = arith.constant 0 : index
    %c0_4 = arith.constant 0 : index
    %3 = vector.load %arg3[%c0_3, %c0_4] : memref<32x1xf32, #tpu.memory_space<vmem>>, vector<32x1xf32>
    %4 = vector.broadcast %3 : vector<32x1xf32> to vector<32x1024xf32>
    %5 = arith.addf %2, %4 : vector<32x1024xf32>
    %cst_5 = arith.constant 0.000000e+00 : f32
    %6 = vector.broadcast %cst_5 : f32 to vector<32x1024xf32>
    %7 = arith.maximumf %5, %6 : vector<32x1024xf32>
    %c0_6 = arith.constant 0 : index
    %c0_7 = arith.constant 0 : index
    %8 = vector.load %arg4[%c0_6, %c0_7] : memref<4x32xf32, #tpu.memory_space<vmem>>, vector<4x32xf32>
    %cst_8 = arith.constant dense<0.000000e+00> : vector<4x1024xf32>
    %9 = tpu.matmul %8, %7, %cst_8 {dimension_numbers = #tpu.dot_dimension_numbers<[1], [0], [0], [1], [0, 0, 1, 1], [], []>} : vector<4x32xf32>, vector<32x1024xf32>, vector<4x1024xf32> -> vector<4x1024xf32>
    %c0_9 = arith.constant 0 : index
    %c0_10 = arith.constant 0 : index
    %10 = vector.load %arg5[%c0_9, %c0_10] : memref<4x1xf32, #tpu.memory_space<vmem>>, vector<4x1xf32>
    %11 = vector.broadcast %10 : vector<4x1xf32> to vector<4x1024xf32>
    %12 = arith.addf %9, %11 : vector<4x1024xf32>
    %c0_11 = arith.constant 0 : index
    %c0_12 = arith.constant 0 : index
    %13 = vector.load %arg6[%c0_11, %c0_12] : memref<4x1024xf32, #tpu.memory_space<vmem>>, vector<4x1024xf32>
    tpu.vector_store %arg6[%c0_11, %c0_12], %12 {strides = array<i32>} : memref<4x1024xf32, #tpu.memory_space<vmem>>, vector<4x1024xf32>,
    return
  }
  func.func @transform_0(%arg0: i32) -> (i32, i32) {
    %c0_i32 = arith.constant 0 : i32
    %c0_i32_0 = arith.constant 0 : i32
    return %c0_i32, %arg0 : i32, i32
  }
  func.func @transform_1(%arg0: i32) -> (i32, i32) {
    %c0_i32 = arith.constant 0 : i32
    %c0_i32_0 = arith.constant 0 : i32
    %c0_i32_1 = arith.constant 0 : i32
    return %c0_i32, %c0_i32_0 : i32, i32
  }
  func.func @transform_2(%arg0: i32) -> (i32, i32) {
    %c0_i32 = arith.constant 0 : i32
    %c0_i32_0 = arith.constant 0 : i32
    %c0_i32_1 = arith.constant 0 : i32
    return %c0_i32, %c0_i32_0 : i32, i32
  }
  func.func @transform_3(%arg0: i32) -> (i32, i32) {
    %c0_i32 = arith.constant 0 : i32
    %c0_i32_0 = arith.constant 0 : i32
    %c0_i32_1 = arith.constant 0 : i32
    return %c0_i32, %c0_i32_0 : i32, i32
  }
  func.func @transform_4(%arg0: i32) -> (i32, i32) {
    %c0_i32 = arith.constant 0 : i32
    %c0_i32_0 = arith.constant 0 : i32
    %c0_i32_1 = arith.constant 0 : i32
    return %c0_i32, %c0_i32_0 : i32, i32
  }
  func.func @transform_5(%arg0: i32) -> (i32, i32) {
    %c0_i32 = arith.constant 0 : i32
    %c0_i32_0 = arith.constant 0 : i32
    return %c0_i32, %arg0 : i32, i32
  }
}

</mosaic_0001>

<llo_original>
// kernel: tpu_custom_call.1
$region0: #{tpu_custom_call.1}
  #allocation0 [shape = 'u32[]', space=smem, size = 0x4, offset = 0x4, fixed_abs, tag = 'smem constant byte address 0x4 - core index']
  #allocation1 [shape = 'u32[144,128]{1,0:T(1,128)}', space=vmem, size = 0x12000, scoped, tag = 'internal scratch']
  %s0 = inlined_call_operand.hbm [shape: f32[8,2048], index: 0, kind: input, shape index: {}]
  %s1 = inlined_call_operand.hbm [shape: f32[32,8], index: 1, kind: input, shape index: {}]
  %s2 = inlined_call_operand.hbm [shape: f32[32,1], index: 2, kind: input, shape index: {}]
  %s3 = inlined_call_operand.hbm [shape: f32[4,32], index: 3, kind: input, shape index: {}]
  %s4 = inlined_call_operand.hbm [shape: f32[4,1], index: 4, kind: input, shape index: {}]
  %s5 = inlined_call_operand.hbm [shape: f32[4,2048], index: 5, kind: output, shape index: {}]
  %s6 = sld [smem:[#allocation0]]
  $region73: #{tpu_custom_call.1} parent=0
    _
  %s8 = ssub.s32 1, %s6
  %s9 = scalar_select 0, %s8, %s6
  $region1: #{tpu_custom_call.1} parent=0
    #allocation2 [shape = 'u8[65536]{0}', space=vmem, size = 0x10000, scoped, tag = 'input window, operand 0']
    #allocation3 [shape = 's32[2]{0}', space=sflag, size = 0x8, scoped, tag = 'scoped memory for tpu_custom_call.1']
    #allocation4 [shape = 's32[2]{0}', space=sflag, size = 0x8, scoped, tag = 'scoped memory for tpu_custom_call.1']
    #allocation5 [shape = 'u8[16384]{0}', space=vmem, size = 0x4000, scoped, tag = 'input window, operand 1, single buffered']
    #allocation6 [shape = 's32[1]{0}', space=sflag, size = 0x4, scoped, tag = 'scoped memory for tpu_custom_call.1']
    #allocation7 [shape = 'u8[16384]{0}', space=vmem, size = 0x4000, scoped, tag = 'input window, operand 2, single buffered']
    #allocation8 [shape = 'u8[2048]{0}', space=vmem, size = 0x800, scoped, tag = 'input window, operand 3, single buffered']
    #allocation9 [shape = 's32[1]{0}', space=sflag, size = 0x4, scoped, tag = 'scoped memory for tpu_custom_call.1']
    #allocation10 [shape = 'u8[2048]{0}', space=vmem, size = 0x800, scoped, tag = 'input window, operand 4, single buffered']
    #allocation11 [shape = 'u8[32768]{0}', space=vmem, size = 0x8000, scoped, tag = 'output window, operand 0']
    %10 = vsyncpa [#allocation3], 0
    %s11 = scalar_lea.sflag [#allocation3], 1
    %12 = vsyncpa %s11, 0
    %13 = vsyncpa [#allocation6], 0
    %14 = vsyncpa [#allocation9], 0
    %15 = vsyncpa [#allocation4], 0
    %s16 = scalar_lea.sflag [#allocation4], 1
    %17 = vsyncpa %s16, 0
    loop: start=0, step=1, limit=4
    $region2: #{tpu_custom_call.1} parent=1 // loop_pre_header
      _
    $region3: #{tpu_custom_call.1} parent=1 // loop_header
      %s19 = sphi 0, %s23
      %p20 = scmp.ge.s32.totalorder %s19, 4
      %s29 = sphi 0, %s31
      %s32 = sphi 0, %s29
      %s33 = sphi 0, %s32
      %s49 = sphi 0, %s33
      %s53 = sphi 0, %s53
      %s55 = sphi 0, %s53
      %s56 = sphi 0, %s55
      %s70 = sphi 0, %s56
      %s74 = sphi 0, %s74
      %s76 = sphi 0, %s74
      %s77 = sphi 0, %s76
      %s91 = sphi 0, %s77
      %s95 = sphi 0, %s95
      %s97 = sphi 0, %s95
      %s98 = sphi 0, %s97
      %s112 = sphi 0, %s98
      %s116 = sphi 0, %s116
      %s118 = sphi 0, %s116
      %s119 = sphi 0, %s118
      %s133 = sphi 0, %s119
      %s139 = sphi 0, %s141
      %s142 = sphi 0, %s139
      %s143 = sphi 0, %s142
      %s159 = sphi 0, %s143
    $region4: #{tpu_custom_call.1} parent=1 // loop_header_branch
      %22 = sbr.rel (%p20) target = $region8
    $region5: #{tpu_custom_call.1} parent=1 // loop_body
      %s24 = ssub.s32 %s19, 1
      %s25 = ssub.s32 %s19, 2
      %s26 = sadd.s32 %s19, 1
      %s27 = ssub.s32 %s19, %s26
      %p28 = scmp.eq.s32.totalorder %s27, 0
      %s30 = sadd.s32 %s29, 1
      %s31 = scalar_select %p28, %s29, %s30
      %p34 = pneg %p28
      %p35 = scmp.eq.s32.totalorder %s19, 1
      %p36 = por %p34, %p35
      %p37 = scmp.ne.s32.totalorder %s29, %s32
      %p38 = scmp.eq.s32.totalorder %s19, 0
      %p39 = por %p37, %p38
      %p40 = scmp.ne.s32.totalorder %s29, %s32
      %p41 = scmp.eq.s32.totalorder %s24, 1
      %p42 = por %p40, %p41
      %p43 = scmp.ne.s32.totalorder %s32, %s33
      %p44 = scmp.eq.s32.totalorder %s24, 0
      %p45 = por %p43, %p44
      %p46 = scmp.ne.s32.totalorder %s32, %s33
      %p47 = scmp.eq.s32.totalorder %s25, 1
      %p48 = por %p46, %p47
      %p50 = scmp.ne.s32.totalorder %s33, %s49
      %p51 = scmp.eq.s32.totalorder %s25, 0
      %p52 = por %p50, %p51
      %s54 = sadd.s32 %s53, 1
      %p57 = scmp.eq.s32.totalorder %s19, 1
      %p58 = scmp.ne.s32.totalorder %s53, %s55
      %p59 = scmp.eq.s32.totalorder %s19, 0
      %p60 = por %p58, %p59
      %p61 = scmp.ne.s32.totalorder %s53, %s55
      %p62 = scmp.eq.s32.totalorder %s24, 1
      %p63 = por %p61, %p62
      %p64 = scmp.ne.s32.totalorder %s55, %s56
      %p65 = scmp.eq.s32.totalorder %s24, 0
      %p66 = por %p64, %p65
      %p67 = scmp.ne.s32.totalorder %s55, %s56
      %p68 = scmp.eq.s32.totalorder %s25, 1
      %p69 = por %p67, %p68
      %p71 = scmp.ne.s32.totalorder %s56, %s70
      %p72 = scmp.eq.s32.totalorder %s25, 0
      %p73 = por %p71, %p72
      %s75 = sadd.s32 %s74, 1
      %p78 = scmp.eq.s32.totalorder %s19, 1
      %p79 = scmp.ne.s32.totalorder %s74, %s76
      %p80 = scmp.eq.s32.totalorder %s19, 0
      %p81 = por %p79, %p80
      %p82 = scmp.ne.s32.totalorder %s74, %s76
      %p83 = scmp.eq.s32.totalorder %s24, 1
      %p84 = por %p82, %p83
      %p85 = scmp.ne.s32.totalorder %s76, %s77
      %p86 = scmp.eq.s32.totalorder %s24, 0
      %p87 = por %p85, %p86
      %p88 = scmp.ne.s32.totalorder %s76, %s77
      %p89 = scmp.eq.s32.totalorder %s25, 1
      %p90 = por %p88, %p89
      %p92 = scmp.ne.s32.totalorder %s77, %s91
      %p93 = scmp.eq.s32.totalorder %s25, 0
      %p94 = por %p92, %p93
      %s96 = sadd.s32 %s95, 1
      %p99 = scmp.eq.s32.totalorder %s19, 1
      %p100 = scmp.ne.s32.totalorder %s95, %s97
      %p101 = scmp.eq.s32.totalorder %s19, 0
      %p102 = por %p100, %p101
      %p103 = scmp.ne.s32.totalorder %s95, %s97
      %p104 = scmp.eq.s32.totalorder %s24, 1
      %p105 = por %p103, %p104
      %p106 = scmp.ne.s32.totalorder %s97, %s98
      %p107 = scmp.eq.s32.totalorder %s24, 0
      %p108 = por %p106, %p107
      %p109 = scmp.ne.s32.totalorder %s97, %s98
      %p110 = scmp.eq.s32.totalorder %s25, 1
      %p111 = por %p109, %p110
      %p113 = scmp.ne.s32.totalorder %s98, %s112
      %p114 = scmp.eq.s32.totalorder %s25, 0
      %p115 = por %p113, %p114
      %s117 = sadd.s32 %s116, 1
      %p120 = scmp.eq.s32.totalorder %s19, 1
      %p121 = scmp.ne.s32.totalorder %s116, %s118
      %p122 = scmp.eq.s32.totalorder %s19, 0
      %p123 = por %p121, %p122
      %p124 = scmp.ne.s32.totalorder %s116, %s118
      %p125 = scmp.eq.s32.totalorder %s24, 1
      %p126 = por %p124, %p125
      %p127 = scmp.ne.s32.totalorder %s118, %s119
      %p128 = scmp.eq.s32.totalorder %s24, 0
      %p129 = por %p127, %p128
      %p130 = scmp.ne.s32.totalorder %s118, %s119
      %p131 = scmp.eq.s32.totalorder %s25, 1
      %p132 = por %p130, %p131
      %p134 = scmp.ne.s32.totalorder %s119, %s133
      %p135 = scmp.eq.s32.totalorder %s25, 0
      %p136 = por %p134, %p135
      %s137 = ssub.s32 %s19, %s26
      %p138 = scmp.eq.s32.totalorder %s137, 0
      %s140 = sadd.s32 %s139, 1
      %s141 = scalar_select %p138, %s139, %s140
      %p144 = pneg %p138
      %p145 = scmp.eq.s32.totalorder %s19, 1
      %p146 = por %p144, %p145
      %p147 = scmp.ne.s32.totalorder %s139, %s142
      %p148 = scmp.eq.s32.totalorder %s19, 0
      %p149 = por %p147, %p148
      %p150 = scmp.ne.s32.totalorder %s139, %s142
      %p151 = scmp.eq.s32.totalorder %s24, 1
      %p152 = por %p150, %p151
      %p153 = scmp.ne.s32.totalorder %s142, %s143
      %p154 = scmp.eq.s32.totalorder %s24, 0
      %p155 = por %p153, %p154
      %p156 = scmp.ne.s32.totalorder %s142, %s143
      %p157 = scmp.eq.s32.totalorder %s25, 1
      %p158 = por %p156, %p157
      %p160 = scmp.ne.s32.totalorder %s143, %s159
      %p161 = scmp.eq.s32.totalorder %s25, 0
      %p162 = por %p160, %p161
      %p163 = scmp.le.s32.totalorder 1, %s19
      %p164 = scmp.lt.s32.totalorder %s19, 3
      %p165 = pnand %p163, %p164
      %p166 = pneg %p165
      // Predicated region
      $region9: #{tpu_custom_call.1} parent=5 // pred_check
        _
      $region10: #{tpu_custom_call.1} parent=5 // pred_check_branch
        %168 = sbr.rel (%p165) target = $region12
      $region11: #{tpu_custom_call.1} parent=5 // pred_region
        %s169 = ssub.s32 %s19, 1
        // Predicated region
        $region13: #{tpu_custom_call.1} parent=11 // pred_check
          %p170 = pneg %p66
        $region14: #{tpu_custom_call.1} parent=11 // pred_check_branch
          %172 = sbr.rel (%p170) target = $region16
        $region15: #{tpu_custom_call.1} parent=11 // pred_region
          %s174 = ssub.s32 512, 512
          %175 = vsyncadd [#allocation6], %s174
          %s176 = sshll.u32 [#allocation5], 4
          %s177 = int_to_ptr.vmem [resolvable:$true] %s176
          %182 = dma.hbm_to_vmem [thread:$0]  %s1, 512, %s177, [#allocation6], 128, 128, 8
        $region16: #{tpu_custom_call.1} parent=11 // pred_fallthru
          _
        // Predicated region
        $region17: #{tpu_custom_call.1} parent=11 // pred_check
          %p183 = pneg %p87
        $region18: #{tpu_custom_call.1} parent=11 // pred_check_branch
          %185 = sbr.rel (%p183) target = $region20
        $region19: #{tpu_custom_call.1} parent=11 // pred_region
          %s187 = ssub.s32 512, 512
          %188 = vsyncadd [#allocation6], %s187
          %s189 = sshll.u32 [#allocation7], 4
          %s190 = int_to_ptr.vmem [resolvable:$true] %s189
          %195 = dma.hbm_to_vmem [thread:$0]  %s2, 512, %s190, [#allocation6], 128, 128, 8
        $region20: #{tpu_custom_call.1} parent=11 // pred_fallthru
          _
        // Predicated region
        $region21: #{tpu_custom_call.1} parent=11 // pred_check
          %p196 = pneg %p108
        $region22: #{tpu_custom_call.1} parent=11 // pred_check_branch
          %198 = sbr.rel (%p196) target = $region24
        $region23: #{tpu_custom_call.1} parent=11 // pred_region
          %s200 = ssub.s32 64, 64
          %201 = vsyncadd [#allocation9], %s200
          %s203 = sshll.u32 [#allocation8], 4
          %s204 = int_to_ptr.vmem [resolvable:$true] %s203
          %206 = dma.hbm_to_vmem [thread:$0]  %s3, 64, %s204, [#allocation9]
        $region24: #{tpu_custom_call.1} parent=11 // pred_fallthru
          _
        // Predicated region
        $region25: #{tpu_custom_call.1} parent=11 // pred_check
          %p207 = pneg %p129
        $region26: #{tpu_custom_call.1} parent=11 // pred_check_branch
          %209 = sbr.rel (%p207) target = $region28
        $region27: #{tpu_custom_call.1} parent=11 // pred_region
          %s211 = ssub.s32 64, 64
          %212 = vsyncadd [#allocation9], %s211
          %s214 = sshll.u32 [#allocation10], 4
          %s215 = int_to_ptr.vmem [resolvable:$true] %s214
          %217 = dma.hbm_to_vmem [thread:$0]  %s4, 64, %s215, [#allocation9]
        $region28: #{tpu_custom_call.1} parent=11 // pred_fallthru
          _
      $region12: #{tpu_custom_call.1} parent=5 // pred_fallthru
        _
      %p218 = scmp.lt.s32.totalorder %s19, 2
      // Predicated region
      $region29: #{tpu_custom_call.1} parent=5 // pred_check
        %p219 = pneg %p218
      $region30: #{tpu_custom_call.1} parent=5 // pred_check_branch
        %221 = sbr.rel (%p219) target = $region32
      $region31: #{tpu_custom_call.1} parent=5 // pred_region
        // Predicated region
        $region33: #{tpu_custom_call.1} parent=31 // pred_check
          %p222 = pneg %p39
        $region34: #{tpu_custom_call.1} parent=31 // pred_check_branch
          %224 = sbr.rel (%p222) target = $region36
        $region35: #{tpu_custom_call.1} parent=31 // pred_region
          %s225 = sand.u32 %s29, 1
          %s226 = scalar_lea.sflag [#allocation3], %s225
          %s227 = sand.u32 %s29, 1
          %s228 = smul.addr %s227, 64
          %s229 = scalar_lea.vmem [#allocation2], %s228
          %s230 = smul.u32 8, %s19
          %s232 = ssub.s32 1024, 1024
          %233 = vsyncadd %s226, %s232
          %s234 = smul.addr %s230, 128
          %s235 = scalar_lea.hbm %s0, %s234
          %s237 = sshll.u32 %s229, 4
          %s238 = int_to_ptr.vmem [resolvable:$true] %s237
          %240 = dma.hbm_to_vmem [thread:$0]  %s235, 1024, %s238, %s226
        $region36: #{tpu_custom_call.1} parent=31 // pred_fallthru
          _
      $region32: #{tpu_custom_call.1} parent=5 // pred_fallthru
        _
      %p241 = scmp.le.s32.totalorder 1, %s19
      %p242 = scmp.lt.s32.totalorder %s19, 3
      %p243 = pnand %p241, %p242
      %p244 = pneg %p243
      // Predicated region
      $region37: #{tpu_custom_call.1} parent=5 // pred_check
        _
      $region38: #{tpu_custom_call.1} parent=5 // pred_check_branch
        %246 = sbr.rel (%p243) target = $region40
      $region39: #{tpu_custom_call.1} parent=5 // pred_region
        %s247 = ssub.s32 %s19, 1
        %s248 = sand.u32 %s32, 1
        %s249 = scalar_lea.sflag [#allocation3], %s248
        %s250 = sand.u32 %s32, 1
        %s251 = smul.addr %s250, 64
        %s252 = scalar_lea.vmem [#allocation2], %s251
        // Predicated region
        $region41: #{tpu_custom_call.1} parent=39 // pred_check
          %p253 = pneg %p45
        $region42: #{tpu_custom_call.1} parent=39 // pred_check_branch
          %255 = sbr.rel (%p253) target = $region44
        $region43: #{tpu_custom_call.1} parent=39 // pred_region
          %256 = dma.done %s249, 1024
        $region44: #{tpu_custom_call.1} parent=39 // pred_fallthru
          _
        // Predicated region
        $region45: #{tpu_custom_call.1} parent=39 // pred_check
          %p257 = pneg %p66
        $region46: #{tpu_custom_call.1} parent=39 // pred_check_branch
          %259 = sbr.rel (%p257) target = $region48
        $region47: #{tpu_custom_call.1} parent=39 // pred_region
          %260 = dma.done [#allocation6], 512
        $region48: #{tpu_custom_call.1} parent=39 // pred_fallthru
          _
        // Predicated region
        $region49: #{tpu_custom_call.1} parent=39 // pred_check
          %p261 = pneg %p87
        $region50: #{tpu_custom_call.1} parent=39 // pred_check_branch
          %263 = sbr.rel (%p261) target = $region52
        $region51: #{tpu_custom_call.1} parent=39 // pred_region
          %264 = dma.done [#allocation6], 512
        $region52: #{tpu_custom_call.1} parent=39 // pred_fallthru
          _
        // Predicated region
        $region53: #{tpu_custom_call.1} parent=39 // pred_check
          %p265 = pneg %p108
        $region54: #{tpu_custom_call.1} parent=39 // pred_check_branch
          %267 = sbr.rel (%p265) target = $region56
        $region55: #{tpu_custom_call.1} parent=39 // pred_region
          %268 = dma.done [#allocation9], 64
        $region56: #{tpu_custom_call.1} parent=39 // pred_fallthru
          _
        // Predicated region
        $region57: #{tpu_custom_call.1} parent=39 // pred_check
          %p269 = pneg %p129
        $region58: #{tpu_custom_call.1} parent=39 // pred_check_branch
          %271 = sbr.rel (%p269) target = $region60
        $region59: #{tpu_custom_call.1} parent=39 // pred_region
          %272 = dma.done [#allocation9], 64
        $region60: #{tpu_custom_call.1} parent=39 // pred_fallthru
          _
        %s273 = sand.u32 %s32, 1
        %s274 = scalar_lea.sflag [#allocation3], %s273
        %s275 = sand.u32 %s32, 1
        %s276 = smul.addr %s275, 64
        %s277 = scalar_lea.vmem [#allocation2], %s276
        %p278 = pneg %p45
        %p279 = pneg %p42
        %p280 = pneg %p66
        %p281 = pneg %p63
        %p282 = pneg %p87
        %p283 = pneg %p84
        %p284 = pneg %p108
        %p285 = pneg %p105
        %p286 = pneg %p129
        %p287 = pneg %p126
        %p288 = pneg %p155
        %p289 = pneg %p152
        %s290 = sand.u32 %s142, 1
        %s291 = scalar_lea.sflag [#allocation4], %s290
        %s292 = sand.u32 %s142, 1
        %s293 = smul.addr %s292, 32
        %s294 = scalar_lea.vmem [#allocation11], %s293
        %s295 = smul.u32 8, %s24
        %s296 = smul.u32 8, %s24
        %v297 = vld [vmem:[#allocation5] sm:$0xff]
        %v298 = vld [vmem:[#allocation5 + $0x8] sm:$0xff]
        %v299 = vld [vmem:[#allocation5 + $0x10] sm:$0xff]
        %v300 = vld [vmem:[#allocation5 + $0x18] sm:$0xff]
        %v301 = vld [vmem:[%s252] sm:$0xff]
        %v302 = vld [vmem:[%s252 + $0x8] sm:$0xff]
        %v303 = vld [vmem:[%s252 + $0x10] sm:$0xff]
        %v304 = vld [vmem:[%s252 + $0x18] sm:$0xff]
        %v305 = vld [vmem:[%s252 + $0x20] sm:$0xff]
        %v306 = vld [vmem:[%s252 + $0x28] sm:$0xff]
        %v307 = vld [vmem:[%s252 + $0x30] sm:$0xff]
        %v308 = vld [vmem:[%s252 + $0x38] sm:$0xff]
        %v309 = vld [vmem:[#allocation7] sm:$0xff]
        %v310 = vld [vmem:[#allocation7 + $0x8] sm:$0xff]
        %v311 = vld [vmem:[#allocation7 + $0x10] sm:$0xff]
        %v312 = vld [vmem:[#allocation7 + $0x18] sm:$0xff]
        %314 = vset.pattern.permute.xlu0 0
        %315 = vperm.xlu0 %314, %v309
        %v316 = vpop.permute.xlu0 %315
        %319 = vset.pattern.permute.xlu0 0
        %320 = vperm.xlu0 %319, %v310
        %v321 = vpop.permute.xlu0 %320
        %324 = vset.pattern.permute.xlu0 0
        %325 = vperm.xlu0 %324, %v311
        %v326 = vpop.permute.xlu0 %325
        %329 = vset.pattern.permute.xlu0 0
        %330 = vperm.xlu0 %329, %v312
        %v331 = vpop.permute.xlu0 %330
        %vm333 = vcmask 64512
        %v335 = vsel %vm333, %v297, 0
        %v338 = vsel %vm333, %v298, 0
        %v341 = vsel %vm333, %v299, 0
        %v344 = vsel %vm333, %v300, 0
        %346 = vmatprep.subr.mxu0 %v302
        %347 = vmatpush1.msra.mxu0 %v301
        %348 = vmatprep.subr.mxu0 0.0
        %349 = vmatpush1.msra.mxu0 0.0
        %350 = vmatprep.subr.mxu0 0.0
        %351 = vmatpush1.msra.mxu0 0.0
        %352 = vmatprep.subr.mxu0 0.0
        %353 = vmatpush1.msra.mxu0 0.0
        %354 = vmatprep.subr.mxu0 0.0
        %355 = vmatpush1.msra.mxu0 0.0
        %356 = vmatprep.subr.mxu0 0.0
        %357 = vmatpush1.msra.mxu0 0.0
        %358 = vmatprep.subr.mxu0 0.0
        %359 = vmatpush1.msra.mxu0 0.0
        %360 = vmatprep.subr.mxu0 0.0
        %361 = vmatpush1.msra.mxu0 0.0
        %362 = vmatprep.subr.mxu0 0.0
        %363 = vmatpush1.msra.mxu0 0.0
        %364 = vmatprep.subr.mxu0 0.0
        %365 = vmatpush1.msra.mxu0 0.0
        %366 = vmatprep.subr.mxu0 0.0
        %367 = vmatpush1.msra.mxu0 0.0
        %368 = vmatprep.subr.mxu0 0.0
        %369 = vmatpush1.msra.mxu0 0.0
        %370 = vmatprep.subr.mxu0 0.0
        %371 = vmatpush1.msra.mxu0 0.0
        %372 = vmatprep.subr.mxu0 0.0
        %373 = vmatpush1.msra.mxu0 0.0
        %374 = vmatprep.subr.mxu0 0.0
        %375 = vmatpush1.msra.mxu0 0.0
        %376 = vmatprep.subr.mxu0 0.0
        %377 = vmatpush1.msra.mxu0 0.0
        %378 = vmatprep.subr.mxu0 0.0
        %379 = vmatpush1.msra.mxu0 0.0
        %380 = vmatprep.subr.mxu0 0.0
        %381 = vmatpush1.msra.mxu0 0.0
        %382 = vmatprep.subr.mxu0 0.0
        %383 = vmatpush1.msra.mxu0 0.0
        %384 = vmatprep.subr.mxu0 0.0
        %385 = vmatpush1.msra.mxu0 0.0
        %386 = vmatprep.subr.mxu0 0.0
        %387 = vmatpush1.msra.mxu0 0.0
        %388 = vmatprep.subr.mxu0 0.0
        %389 = vmatpush1.msra.mxu0 0.0
        %390 = vmatprep.subr.mxu0 0.0
        %391 = vmatpush1.msra.mxu0 0.0
        %392 = vmatprep.subr.mxu0 0.0
        %393 = vmatpush1.msra.mxu0 0.0
        %394 = vmatprep.subr.mxu0 0.0
        %395 = vmatpush1.msra.mxu0 0.0
        %396 = vmatprep.subr.mxu0 0.0
        %397 = vmatpush1.msra.mxu0 0.0
        %398 = vmatprep.subr.mxu0 0.0
        %399 = vmatpush1.msra.mxu0 0.0
        %400 = vmatprep.subr.mxu0 0.0
        %401 = vmatpush1.msra.mxu0 0.0
        %402 = vmatprep.subr.mxu0 0.0
        %403 = vmatpush1.msra.mxu0 0.0
        %404 = vmatprep.subr.mxu0 0.0
        %405 = vmatpush1.msra.mxu0 0.0
        %406 = vmatprep.subr.mxu0 0.0
        %407 = vmatpush1.msra.mxu0 0.0
        %408 = vmatprep.subr.mxu0 0.0
        %409 = vmatpush1.msra.mxu0 0.0
        %410 = vmatprep.mubr.f32.mxu0 0.0
        %411 = vmatmul.mubr.f32.gmra.mrb[0].mxu0 %v335
        %v412 = vpop.f32.mrb[0].mxu0
        %v413 = vadd.f32 %v316, %v412
        %v414 = vpop.f32.mrb[0].mxu0
        %v415 = vadd.f32 %v316, %v414
        %416 = vmatprep.mubr.f32.mxu0 0.0
        %417 = vmatmul.mubr.f32.gmra.mrb[0].mxu0 %v338
        %v418 = vpop.f32.mrb[0].mxu0
        %v419 = vadd.f32 %v321, %v418
        %v420 = vpop.f32.mrb[0].mxu0
        %v421 = vadd.f32 %v321, %v420
        %422 = vmatprep.mubr.f32.mxu0 0.0
        %423 = vmatmul.mubr.f32.gmra.mrb[0].mxu0 %v341
        %v424 = vpop.f32.mrb[0].mxu0
        %v425 = vadd.f32 %v326, %v424
        %v426 = vpop.f32.mrb[0].mxu0
        %v427 = vadd.f32 %v326, %v426
        %428 = vmatprep.mubr.f32.mxu0 0.0
        %429 = vmatmul.mubr.f32.gmra.mrb[0].mxu0 %v344
        %v430 = vpop.f32.mrb[0].mxu0
        %v431 = vadd.f32 %v331, %v430
        %v432 = vpop.f32.mrb[0].mxu0
        %v433 = vadd.f32 %v331, %v432
        %434 = vdwg.mxu0
        %435 = vmatprep.subr.mxu0 %v304
        %436 = vmatpush1.msra.mxu0 %v303
        %437 = vmatprep.subr.mxu0 0.0
        %438 = vmatpush1.msra.mxu0 0.0
        %439 = vmatprep.subr.mxu0 0.0
        %440 = vmatpush1.msra.mxu0 0.0
        %441 = vmatprep.subr.mxu0 0.0
        %442 = vmatpush1.msra.mxu0 0.0
        %443 = vmatprep.subr.mxu0 0.0
        %444 = vmatpush1.msra.mxu0 0.0
        %445 = vmatprep.subr.mxu0 0.0
        %446 = vmatpush1.msra.mxu0 0.0
        %447 = vmatprep.subr.mxu0 0.0
        %448 = vmatpush1.msra.mxu0 0.0
        %449 = vmatprep.subr.mxu0 0.0
        %450 = vmatpush1.msra.mxu0 0.0
        %451 = vmatprep.subr.mxu0 0.0
        %452 = vmatpush1.msra.mxu0 0.0
        %453 = vmatprep.subr.mxu0 0.0
        %454 = vmatpush1.msra.mxu0 0.0
        %455 = vmatprep.subr.mxu0 0.0
        %456 = vmatpush1.msra.mxu0 0.0
        %457 = vmatprep.subr.mxu0 0.0
        %458 = vmatpush1.msra.mxu0 0.0
        %459 = vmatprep.subr.mxu0 0.0
        %460 = vmatpush1.msra.mxu0 0.0
        %461 = vmatprep.subr.mxu0 0.0
        %462 = vmatpush1.msra.mxu0 0.0
        %463 = vmatprep.subr.mxu0 0.0
        %464 = vmatpush1.msra.mxu0 0.0
        %465 = vmatprep.subr.mxu0 0.0
        %466 = vmatpush1.msra.mxu0 0.0
        %467 = vmatprep.subr.mxu0 0.0
        %468 = vmatpush1.msra.mxu0 0.0
        %469 = vmatprep.subr.mxu0 0.0
        %470 = vmatpush1.msra.mxu0 0.0
        %471 = vmatprep.subr.mxu0 0.0
        %472 = vmatpush1.msra.mxu0 0.0
        %473 = vmatprep.subr.mxu0 0.0
        %474 = vmatpush1.msra.mxu0 0.0
        %475 = vmatprep.subr.mxu0 0.0
        %476 = vmatpush1.msra.mxu0 0.0
        %477 = vmatprep.subr.mxu0 0.0
        %478 = vmatpush1.msra.mxu0 0.0
        %479 = vmatprep.subr.mxu0 0.0
        %480 = vmatpush1.msra.mxu0 0.0
        %481 = vmatprep.subr.mxu0 0.0
        %482 = vmatpush1.msra.mxu0 0.0
        %483 = vmatprep.subr.mxu0 0.0
        %484 = vmatpush1.msra.mxu0 0.0
        %485 = vmatprep.subr.mxu0 0.0
        %486 = vmatpush1.msra.mxu0 0.0
        %487 = vmatprep.subr.mxu0 0.0
        %488 = vmatpush1.msra.mxu0 0.0
        %489 = vmatprep.subr.mxu0 0.0
        %490 = vmatpush1.msra.mxu0 0.0
        %491 = vmatprep.subr.mxu0 0.0
        %492 = vmatpush1.msra.mxu0 0.0
        %493 = vmatprep.subr.mxu0 0.0
        %494 = vmatpush1.msra.mxu0 0.0
        %495 = vmatprep.subr.mxu0 0.0
        %496 = vmatpush1.msra.mxu0 0.0
        %497 = vmatprep.subr.mxu0 0.0
        %498 = vmatpush1.msra.mxu0 0.0
        %499 = vmatprep.mubr.f32.mxu0 0.0
        %500 = vmatmul.mubr.f32.gmra.mrb[0].mxu0 %v335
        %v501 = vpop.f32.mrb[0].mxu0
        %v502 = vadd.f32 %v316, %v501
        %v503 = vpop.f32.mrb[0].mxu0
        %v504 = vadd.f32 %v316, %v503
        %505 = vmatprep.mubr.f32.mxu0 0.0
        %506 = vmatmul.mubr.f32.gmra.mrb[0].mxu0 %v338
        %v507 = vpop.f32.mrb[0].mxu0
        %v508 = vadd.f32 %v321, %v507
        %v509 = vpop.f32.mrb[0].mxu0
        %v510 = vadd.f32 %v321, %v509
        %511 = vmatprep.mubr.f32.mxu0 0.0
        %512 = vmatmul.mubr.f32.gmra.mrb[0].mxu0 %v341
        %v513 = vpop.f32.mrb[0].mxu0
        %v514 = vadd.f32 %v326, %v513
        %v515 = vpop.f32.mrb[0].mxu0
        %v516 = vadd.f32 %v326, %v515
        %517 = vmatprep.mubr.f32.mxu0 0.0
        %518 = vmatmul.mubr.f32.gmra.mrb[0].mxu0 %v344
        %v519 = vpop.f32.mrb[0].mxu0
        %v520 = vadd.f32 %v331, %v519
        %v521 = vpop.f32.mrb[0].mxu0
        %v522 = vadd.f32 %v331, %v521
        %523 = vdwg.mxu0
        %524 = vmatprep.subr.mxu0 %v306
        %525 = vmatpush1.msra.mxu0 %v305
        %526 = vmatprep.subr.mxu0 0.0
        %527 = vmatpush1.msra.mxu0 0.0
        %528 = vmatprep.subr.mxu0 0.0
        %529 = vmatpush1.msra.mxu0 0.0
        %530 = vmatprep.subr.mxu0 0.0
        %531 = vmatpush1.msra.mxu0 0.0
        %532 = vmatprep.subr.mxu0 0.0
        %533 = vmatpush1.msra.mxu0 0.0
        %534 = vmatprep.subr.mxu0 0.0
        %535 = vmatpush1.msra.mxu0 0.0
        %536 = vmatprep.subr.mxu0 0.0
        %537 = vmatpush1.msra.mxu0 0.0
        %538 = vmatprep.subr.mxu0 0.0
        %539 = vmatpush1.msra.mxu0 0.0
        %540 = vmatprep.subr.mxu0 0.0
        %541 = vmatpush1.msra.mxu0 0.0
        %542 = vmatprep.subr.mxu0 0.0
        %543 = vmatpush1.msra.mxu0 0.0
        %544 = vmatprep.subr.mxu0 0.0
        %545 = vmatpush1.msra.mxu0 0.0
        %546 = vmatprep.subr.mxu0 0.0
        %547 = vmatpush1.msra.mxu0 0.0
        %548 = vmatprep.subr.mxu0 0.0
        %549 = vmatpush1.msra.mxu0 0.0
        %550 = vmatprep.subr.mxu0 0.0
        %551 = vmatpush1.msra.mxu0 0.0
        %552 = vmatprep.subr.mxu0 0.0
        %553 = vmatpush1.msra.mxu0 0.0
        %554 = vmatprep.subr.mxu0 0.0
        %555 = vmatpush1.msra.mxu0 0.0
        %556 = vmatprep.subr.mxu0 0.0
        %557 = vmatpush1.msra.mxu0 0.0
        %558 = vmatprep.subr.mxu0 0.0
        %559 = vmatpush1.msra.mxu0 0.0
        %560 = vmatprep.subr.mxu0 0.0
        %561 = vmatpush1.msra.mxu0 0.0
        %562 = vmatprep.subr.mxu0 0.0
        %563 = vmatpush1.msra.mxu0 0.0
        %564 = vmatprep.subr.mxu0 0.0
        %565 = vmatpush1.msra.mxu0 0.0
        %566 = vmatprep.subr.mxu0 0.0
        %567 = vmatpush1.msra.mxu0 0.0
        %568 = vmatprep.subr.mxu0 0.0
        %569 = vmatpush1.msra.mxu0 0.0
        %570 = vmatprep.subr.mxu0 0.0
        %571 = vmatpush1.msra.mxu0 0.0
        %572 = vmatprep.subr.mxu0 0.0
        %573 = vmatpush1.msra.mxu0 0.0
        %574 = vmatprep.subr.mxu0 0.0
        %575 = vmatpush1.msra.mxu0 0.0
        %576 = vmatprep.subr.mxu0 0.0
        %577 = vmatpush1.msra.mxu0 0.0
        %578 = vmatprep.subr.mxu0 0.0
        %579 = vmatpush1.msra.mxu0 0.0
        %580 = vmatprep.subr.mxu0 0.0
        %581 = vmatpush1.msra.mxu0 0.0
        %582 = vmatprep.subr.mxu0 0.0
        %583 = vmatpush1.msra.mxu0 0.0
        %584 = vmatprep.subr.mxu0 0.0
        %585 = vmatpush1.msra.mxu0 0.0
        %586 = vmatprep.subr.mxu0 0.0
        %587 = vmatpush1.msra.mxu0 0.0
        %588 = vmatprep.mubr.f32.mxu0 0.0
        %589 = vmatmul.mubr.f32.gmra.mrb[0].mxu0 %v335
        %v590 = vpop.f32.mrb[0].mxu0
        %v591 = vadd.f32 %v316, %v590
        %v592 = vpop.f32.mrb[0].mxu0
        %v593 = vadd.f32 %v316, %v592
        %594 = vmatprep.mubr.f32.mxu0 0.0
        %595 = vmatmul.mubr.f32.gmra.mrb[0].mxu0 %v338
        %v596 = vpop.f32.mrb[0].mxu0
        %v597 = vadd.f32 %v321, %v596
        %v598 = vpop.f32.mrb[0].mxu0
        %v599 = vadd.f32 %v321, %v598
        %600 = vmatprep.mubr.f32.mxu0 0.0
        %601 = vmatmul.mubr.f32.gmra.mrb[0].mxu0 %v341
        %v602 = vpop.f32.mrb[0].mxu0
        %v603 = vadd.f32 %v326, %v602
        %v604 = vpop.f32.mrb[0].mxu0
        %v605 = vadd.f32 %v326, %v604
        %606 = vmatprep.mubr.f32.mxu0 0.0
        %607 = vmatmul.mubr.f32.gmra.mrb[0].mxu0 %v344
        %v608 = vpop.f32.mrb[0].mxu0
        %v609 = vadd.f32 %v331, %v608
        %v610 = vpop.f32.mrb[0].mxu0
        %v611 = vadd.f32 %v331, %v610
        %612 = vdwg.mxu0
        %613 = vmatprep.subr.mxu0 %v308
        %614 = vmatpush1.msra.mxu0 %v307
        %615 = vmatprep.subr.mxu0 0.0
        %616 = vmatpush1.msra.mxu0 0.0
        %617 = vmatprep.subr.mxu0 0.0
        %618 = vmatpush1.msra.mxu0 0.0
        %619 = vmatprep.subr.mxu0 0.0
        %620 = vmatpush1.msra.mxu0 0.0
        %621 = vmatprep.subr.mxu0 0.0
        %622 = vmatpush1.msra.mxu0 0.0
        %623 = vmatprep.subr.mxu0 0.0
        %624 = vmatpush1.msra.mxu0 0.0
        %625 = vmatprep.subr.mxu0 0.0
        %626 = vmatpush1.msra.mxu0 0.0
        %627 = vmatprep.subr.mxu0 0.0
        %628 = vmatpush1.msra.mxu0 0.0
        %629 = vmatprep.subr.mxu0 0.0
        %630 = vmatpush1.msra.mxu0 0.0
        %631 = vmatprep.subr.mxu0 0.0
        %632 = vmatpush1.msra.mxu0 0.0
        %633 = vmatprep.subr.mxu0 0.0
        %634 = vmatpush1.msra.mxu0 0.0
        %635 = vmatprep.subr.mxu0 0.0
        %636 = vmatpush1.msra.mxu0 0.0
        %637 = vmatprep.subr.mxu0 0.0
        %638 = vmatpush1.msra.mxu0 0.0
        %639 = vmatprep.subr.mxu0 0.0
        %640 = vmatpush1.msra.mxu0 0.0
        %641 = vmatprep.subr.mxu0 0.0
        %642 = vmatpush1.msra.mxu0 0.0
        %643 = vmatprep.subr.mxu0 0.0
        %644 = vmatpush1.msra.mxu0 0.0
        %645 = vmatprep.subr.mxu0 0.0
        %646 = vmatpush1.msra.mxu0 0.0
        %647 = vmatprep.subr.mxu0 0.0
        %648 = vmatpush1.msra.mxu0 0.0
        %649 = vmatprep.subr.mxu0 0.0
        %650 = vmatpush1.msra.mxu0 0.0
        %651 = vmatprep.subr.mxu0 0.0
        %652 = vmatpush1.msra.mxu0 0.0
        %653 = vmatprep.subr.mxu0 0.0
        %654 = vmatpush1.msra.mxu0 0.0
        %655 = vmatprep.subr.mxu0 0.0
        %656 = vmatpush1.msra.mxu0 0.0
        %657 = vmatprep.subr.mxu0 0.0
        %658 = vmatpush1.msra.mxu0 0.0
        %659 = vmatprep.subr.mxu0 0.0
        %660 = vmatpush1.msra.mxu0 0.0
        %661 = vmatprep.subr.mxu0 0.0
        %662 = vmatpush1.msra.mxu0 0.0
        %663 = vmatprep.subr.mxu0 0.0
        %664 = vmatpush1.msra.mxu0 0.0
        %665 = vmatprep.subr.mxu0 0.0
        %666 = vmatpush1.msra.mxu0 0.0
        %667 = vmatprep.subr.mxu0 0.0
        %668 = vmatpush1.msra.mxu0 0.0
        %669 = vmatprep.subr.mxu0 0.0
        %670 = vmatpush1.msra.mxu0 0.0
        %671 = vmatprep.subr.mxu0 0.0
        %672 = vmatpush1.msra.mxu0 0.0
        %673 = vmatprep.subr.mxu0 0.0
        %674 = vmatpush1.msra.mxu0 0.0
        %675 = vmatprep.subr.mxu0 0.0
        %676 = vmatpush1.msra.mxu0 0.0
        %677 = vmatprep.mubr.f32.mxu0 0.0
        %678 = vmatmul.mubr.f32.gmra.mrb[0].mxu0 %v335
        %v679 = vpop.f32.mrb[0].mxu0
        %v680 = vadd.f32 %v316, %v679
        %v681 = vpop.f32.mrb[0].mxu0
        %v682 = vadd.f32 %v316, %v681
        %683 = vmatprep.mubr.f32.mxu0 0.0
        %684 = vmatmul.mubr.f32.gmra.mrb[0].mxu0 %v338
        %v685 = vpop.f32.mrb[0].mxu0
        %v686 = vadd.f32 %v321, %v685
        %v687 = vpop.f32.mrb[0].mxu0
        %v688 = vadd.f32 %v321, %v687
        %689 = vmatprep.mubr.f32.mxu0 0.0
        %690 = vmatmul.mubr.f32.gmra.mrb[0].mxu0 %v341
        %v691 = vpop.f32.mrb[0].mxu0
        %v692 = vadd.f32 %v326, %v691
        %v693 = vpop.f32.mrb[0].mxu0
        %v694 = vadd.f32 %v326, %v693
        %695 = vmatprep.mubr.f32.mxu0 0.0
        %696 = vmatmul.mubr.f32.gmra.mrb[0].mxu0 %v344
        %v697 = vpop.f32.mrb[0].mxu0
        %v698 = vadd.f32 %v331, %v697
        %v699 = vpop.f32.mrb[0].mxu0
        %v700 = vadd.f32 %v331, %v699
        %701 = vdwg.mxu0
        %v702 = vmax.f32 %v413, 0.0
        %v703 = vmax.f32 %v415, 0.0
        %v704 = vmax.f32 %v502, 0.0
        %v705 = vmax.f32 %v504, 0.0
        %v706 = vmax.f32 %v591, 0.0
        %v707 = vmax.f32 %v593, 0.0
        %v708 = vmax.f32 %v680, 0.0
        %v709 = vmax.f32 %v682, 0.0
        %v710 = vmax.f32 %v419, 0.0
        %v711 = vmax.f32 %v421, 0.0
        %v712 = vmax.f32 %v508, 0.0
        %v713 = vmax.f32 %v510, 0.0
        %v714 = vmax.f32 %v597, 0.0
        %v715 = vmax.f32 %v599, 0.0
        %v716 = vmax.f32 %v686, 0.0
        %v717 = vmax.f32 %v688, 0.0
        %v718 = vmax.f32 %v425, 0.0
        %v719 = vmax.f32 %v427, 0.0
        %v720 = vmax.f32 %v514, 0.0
        %v721 = vmax.f32 %v516, 0.0
        %v722 = vmax.f32 %v603, 0.0
        %v723 = vmax.f32 %v605, 0.0
        %v724 = vmax.f32 %v692, 0.0
        %v725 = vmax.f32 %v694, 0.0
        %v726 = vmax.f32 %v431, 0.0
        %v727 = vmax.f32 %v433, 0.0
        %v728 = vmax.f32 %v520, 0.0
        %v729 = vmax.f32 %v522, 0.0
        %v730 = vmax.f32 %v609, 0.0
        %v731 = vmax.f32 %v611, 0.0
        %v732 = vmax.f32 %v698, 0.0
        %v733 = vmax.f32 %v700, 0.0
        %v734 = vld [vmem:[#allocation8] sm:$0xf]
        %v735 = vld [vmem:[#allocation10] sm:$0xf]
        %737 = vset.pattern.permute.xlu0 0
        %738 = vperm.xlu0 %737, %v735
        %v739 = vpop.permute.xlu0 %738
        %vm741 = vcmask 261120
        %v743 = vsel %vm741, %v734, 0
        %745 = vmatprep.subr.mxu0 %v703
        %746 = vmatpush1.msra.mxu0 %v702
        %747 = vmatprep.subr.mxu0 %v711
        %748 = vmatpush1.msra.mxu0 %v710
        %749 = vmatprep.subr.mxu0 %v719
        %750 = vmatpush1.msra.mxu0 %v718
        %751 = vmatprep.subr.mxu0 %v727
        %752 = vmatpush1.msra.mxu0 %v726
        %753 = vmatprep.subr.mxu0 0.0
        %754 = vmatpush1.msra.mxu0 0.0
        %755 = vmatprep.subr.mxu0 0.0
        %756 = vmatpush1.msra.mxu0 0.0
        %757 = vmatprep.subr.mxu0 0.0
        %758 = vmatpush1.msra.mxu0 0.0
        %759 = vmatprep.subr.mxu0 0.0
        %760 = vmatpush1.msra.mxu0 0.0
        %761 = vmatprep.subr.mxu0 0.0
        %762 = vmatpush1.msra.mxu0 0.0
        %763 = vmatprep.subr.mxu0 0.0
        %764 = vmatpush1.msra.mxu0 0.0
        %765 = vmatprep.subr.mxu0 0.0
        %766 = vmatpush1.msra.mxu0 0.0
        %767 = vmatprep.subr.mxu0 0.0
        %768 = vmatpush1.msra.mxu0 0.0
        %769 = vmatprep.subr.mxu0 0.0
        %770 = vmatpush1.msra.mxu0 0.0
        %771 = vmatprep.subr.mxu0 0.0
        %772 = vmatpush1.msra.mxu0 0.0
        %773 = vmatprep.subr.mxu0 0.0
        %774 = vmatpush1.msra.mxu0 0.0
        %775 = vmatprep.subr.mxu0 0.0
        %776 = vmatpush1.msra.mxu0 0.0
        %777 = vmatprep.subr.mxu0 0.0
        %778 = vmatpush1.msra.mxu0 0.0
        %779 = vmatprep.subr.mxu0 0.0
        %780 = vmatpush1.msra.mxu0 0.0
        %781 = vmatprep.subr.mxu0 0.0
        %782 = vmatpush1.msra.mxu0 0.0
        %783 = vmatprep.subr.mxu0 0.0
        %784 = vmatpush1.msra.mxu0 0.0
        %785 = vmatprep.subr.mxu0 0.0
        %786 = vmatpush1.msra.mxu0 0.0
        %787 = vmatprep.subr.mxu0 0.0
        %788 = vmatpush1.msra.mxu0 0.0
        %789 = vmatprep.subr.mxu0 0.0
        %790 = vmatpush1.msra.mxu0 0.0
        %791 = vmatprep.subr.mxu0 0.0
        %792 = vmatpush1.msra.mxu0 0.0
        %793 = vmatprep.subr.mxu0 0.0
        %794 = vmatpush1.msra.mxu0 0.0
        %795 = vmatprep.subr.mxu0 0.0
        %796 = vmatpush1.msra.mxu0 0.0
        %797 = vmatprep.subr.mxu0 0.0
        %798 = vmatpush1.msra.mxu0 0.0
        %799 = vmatprep.subr.mxu0 0.0
        %800 = vmatpush1.msra.mxu0 0.0
        %801 = vmatprep.subr.mxu0 0.0
        %802 = vmatpush1.msra.mxu0 0.0
        %803 = vmatprep.subr.mxu0 0.0
        %804 = vmatpush1.msra.mxu0 0.0
        %805 = vmatprep.subr.mxu0 0.0
        %806 = vmatpush1.msra.mxu0 0.0
        %807 = vmatprep.subr.mxu0 0.0
        %808 = vmatpush1.msra.mxu0 0.0
        %809 = vmatprep.mubr.f32.mxu0 0.0
        %810 = vmatmul.mubr.f32.gmra.mrb[0].mxu0 %v743
        %v811 = vpop.f32.mrb[0].mxu0
        %v812 = vadd.f32 %v739, %v811
        %v813 = vpop.f32.mrb[0].mxu0
        %v814 = vadd.f32 %v739, %v813
        %815 = vdwg.mxu0
        %816 = vmatprep.subr.mxu0 %v705
        %817 = vmatpush1.msra.mxu0 %v704
        %818 = vmatprep.subr.mxu0 %v713
        %819 = vmatpush1.msra.mxu0 %v712
        %820 = vmatprep.subr.mxu0 %v721
        %821 = vmatpush1.msra.mxu0 %v720
        %822 = vmatprep.subr.mxu0 %v729
        %823 = vmatpush1.msra.mxu0 %v728
        %824 = vmatprep.subr.mxu0 0.0
        %825 = vmatpush1.msra.mxu0 0.0
        %826 = vmatprep.subr.mxu0 0.0
        %827 = vmatpush1.msra.mxu0 0.0
        %828 = vmatprep.subr.mxu0 0.0
        %829 = vmatpush1.msra.mxu0 0.0
        %830 = vmatprep.subr.mxu0 0.0
        %831 = vmatpush1.msra.mxu0 0.0
        %832 = vmatprep.subr.mxu0 0.0
        %833 = vmatpush1.msra.mxu0 0.0
        %834 = vmatprep.subr.mxu0 0.0
        %835 = vmatpush1.msra.mxu0 0.0
        %836 = vmatprep.subr.mxu0 0.0
        %837 = vmatpush1.msra.mxu0 0.0
        %838 = vmatprep.subr.mxu0 0.0
        %839 = vmatpush1.msra.mxu0 0.0
        %840 = vmatprep.subr.mxu0 0.0
        %841 = vmatpush1.msra.mxu0 0.0
        %842 = vmatprep.subr.mxu0 0.0
        %843 = vmatpush1.msra.mxu0 0.0
        %844 = vmatprep.subr.mxu0 0.0
        %845 = vmatpush1.msra.mxu0 0.0
        %846 = vmatprep.subr.mxu0 0.0
        %847 = vmatpush1.msra.mxu0 0.0
        %848 = vmatprep.subr.mxu0 0.0
        %849 = vmatpush1.msra.mxu0 0.0
        %850 = vmatprep.subr.mxu0 0.0
        %851 = vmatpush1.msra.mxu0 0.0
        %852 = vmatprep.subr.mxu0 0.0
        %853 = vmatpush1.msra.mxu0 0.0
        %854 = vmatprep.subr.mxu0 0.0
        %855 = vmatpush1.msra.mxu0 0.0
        %856 = vmatprep.subr.mxu0 0.0
        %857 = vmatpush1.msra.mxu0 0.0
        %858 = vmatprep.subr.mxu0 0.0
        %859 = vmatpush1.msra.mxu0 0.0
        %860 = vmatprep.subr.mxu0 0.0
        %861 = vmatpush1.msra.mxu0 0.0
        %862 = vmatprep.subr.mxu0 0.0
        %863 = vmatpush1.msra.mxu0 0.0
        %864 = vmatprep.subr.mxu0 0.0
        %865 = vmatpush1.msra.mxu0 0.0
        %866 = vmatprep.subr.mxu0 0.0
        %867 = vmatpush1.msra.mxu0 0.0
        %868 = vmatprep.subr.mxu0 0.0
        %869 = vmatpush1.msra.mxu0 0.0
        %870 = vmatprep.subr.mxu0 0.0
        %871 = vmatpush1.msra.mxu0 0.0
        %872 = vmatprep.subr.mxu0 0.0
        %873 = vmatpush1.msra.mxu0 0.0
        %874 = vmatprep.subr.mxu0 0.0
        %875 = vmatpush1.msra.mxu0 0.0
        %876 = vmatprep.subr.mxu0 0.0
        %877 = vmatpush1.msra.mxu0 0.0
        %878 = vmatprep.subr.mxu0 0.0
        %879 = vmatpush1.msra.mxu0 0.0
        %880 = vmatprep.mubr.f32.mxu0 0.0
        %881 = vmatmul.mubr.f32.gmra.mrb[0].mxu0 %v743
        %v882 = vpop.f32.mrb[0].mxu0
        %v883 = vadd.f32 %v739, %v882
        %v884 = vpop.f32.mrb[0].mxu0
        %v885 = vadd.f32 %v739, %v884
        %886 = vdwg.mxu0
        %887 = vmatprep.subr.mxu0 %v707
        %888 = vmatpush1.msra.mxu0 %v706
        %889 = vmatprep.subr.mxu0 %v715
        %890 = vmatpush1.msra.mxu0 %v714
        %891 = vmatprep.subr.mxu0 %v723
        %892 = vmatpush1.msra.mxu0 %v722
        %893 = vmatprep.subr.mxu0 %v731
        %894 = vmatpush1.msra.mxu0 %v730
        %895 = vmatprep.subr.mxu0 0.0
        %896 = vmatpush1.msra.mxu0 0.0
        %897 = vmatprep.subr.mxu0 0.0
        %898 = vmatpush1.msra.mxu0 0.0
        %899 = vmatprep.subr.mxu0 0.0
        %900 = vmatpush1.msra.mxu0 0.0
        %901 = vmatprep.subr.mxu0 0.0
        %902 = vmatpush1.msra.mxu0 0.0
        %903 = vmatprep.subr.mxu0 0.0
        %904 = vmatpush1.msra.mxu0 0.0
        %905 = vmatprep.subr.mxu0 0.0
        %906 = vmatpush1.msra.mxu0 0.0
        %907 = vmatprep.subr.mxu0 0.0
        %908 = vmatpush1.msra.mxu0 0.0
        %909 = vmatprep.subr.mxu0 0.0
        %910 = vmatpush1.msra.mxu0 0.0
        %911 = vmatprep.subr.mxu0 0.0
        %912 = vmatpush1.msra.mxu0 0.0
        %913 = vmatprep.subr.mxu0 0.0
        %914 = vmatpush1.msra.mxu0 0.0
        %915 = vmatprep.subr.mxu0 0.0
        %916 = vmatpush1.msra.mxu0 0.0
        %917 = vmatprep.subr.mxu0 0.0
        %918 = vmatpush1.msra.mxu0 0.0
        %919 = vmatprep.subr.mxu0 0.0
        %920 = vmatpush1.msra.mxu0 0.0
        %921 = vmatprep.subr.mxu0 0.0
        %922 = vmatpush1.msra.mxu0 0.0
        %923 = vmatprep.subr.mxu0 0.0
        %924 = vmatpush1.msra.mxu0 0.0
        %925 = vmatprep.subr.mxu0 0.0
        %926 = vmatpush1.msra.mxu0 0.0
        %927 = vmatprep.subr.mxu0 0.0
        %928 = vmatpush1.msra.mxu0 0.0
        %929 = vmatprep.subr.mxu0 0.0
        %930 = vmatpush1.msra.mxu0 0.0
        %931 = vmatprep.subr.mxu0 0.0
        %932 = vmatpush1.msra.mxu0 0.0
        %933 = vmatprep.subr.mxu0 0.0
        %934 = vmatpush1.msra.mxu0 0.0
        %935 = vmatprep.subr.mxu0 0.0
        %936 = vmatpush1.msra.mxu0 0.0
        %937 = vmatprep.subr.mxu0 0.0
        %938 = vmatpush1.msra.mxu0 0.0
        %939 = vmatprep.subr.mxu0 0.0
        %940 = vmatpush1.msra.mxu0 0.0
        %941 = vmatprep.subr.mxu0 0.0
        %942 = vmatpush1.msra.mxu0 0.0
        %943 = vmatprep.subr.mxu0 0.0
        %944 = vmatpush1.msra.mxu0 0.0
        %945 = vmatprep.subr.mxu0 0.0
        %946 = vmatpush1.msra.mxu0 0.0
        %947 = vmatprep.subr.mxu0 0.0
        %948 = vmatpush1.msra.mxu0 0.0
        %949 = vmatprep.subr.mxu0 0.0
        %950 = vmatpush1.msra.mxu0 0.0
        %951 = vmatprep.mubr.f32.mxu0 0.0
        %952 = vmatmul.mubr.f32.gmra.mrb[0].mxu0 %v743
        %v953 = vpop.f32.mrb[0].mxu0
        %v954 = vadd.f32 %v739, %v953
        %v955 = vpop.f32.mrb[0].mxu0
        %v956 = vadd.f32 %v739, %v955
        %957 = vdwg.mxu0
        %958 = vmatprep.subr.mxu0 %v709
        %959 = vmatpush1.msra.mxu0 %v708
        %960 = vmatprep.subr.mxu0 %v717
        %961 = vmatpush1.msra.mxu0 %v716
        %962 = vmatprep.subr.mxu0 %v725
        %963 = vmatpush1.msra.mxu0 %v724
        %964 = vmatprep.subr.mxu0 %v733
        %965 = vmatpush1.msra.mxu0 %v732
        %966 = vmatprep.subr.mxu0 0.0
        %967 = vmatpush1.msra.mxu0 0.0
        %968 = vmatprep.subr.mxu0 0.0
        %969 = vmatpush1.msra.mxu0 0.0
        %970 = vmatprep.subr.mxu0 0.0
        %971 = vmatpush1.msra.mxu0 0.0
        %972 = vmatprep.subr.mxu0 0.0
        %973 = vmatpush1.msra.mxu0 0.0
        %974 = vmatprep.subr.mxu0 0.0
        %975 = vmatpush1.msra.mxu0 0.0
        %976 = vmatprep.subr.mxu0 0.0
        %977 = vmatpush1.msra.mxu0 0.0
        %978 = vmatprep.subr.mxu0 0.0
        %979 = vmatpush1.msra.mxu0 0.0
        %980 = vmatprep.subr.mxu0 0.0
        %981 = vmatpush1.msra.mxu0 0.0
        %982 = vmatprep.subr.mxu0 0.0
        %983 = vmatpush1.msra.mxu0 0.0
        %984 = vmatprep.subr.mxu0 0.0
        %985 = vmatpush1.msra.mxu0 0.0
        %986 = vmatprep.subr.mxu0 0.0
        %987 = vmatpush1.msra.mxu0 0.0
        %988 = vmatprep.subr.mxu0 0.0
        %989 = vmatpush1.msra.mxu0 0.0
        %990 = vmatprep.subr.mxu0 0.0
        %991 = vmatpush1.msra.mxu0 0.0
        %992 = vmatprep.subr.mxu0 0.0
        %993 = vmatpush1.msra.mxu0 0.0
        %994 = vmatprep.subr.mxu0 0.0
        %995 = vmatpush1.msra.mxu0 0.0
        %996 = vmatprep.subr.mxu0 0.0
        %997 = vmatpush1.msra.mxu0 0.0
        %998 = vmatprep.subr.mxu0 0.0
        %999 = vmatpush1.msra.mxu0 0.0
        %1000 = vmatprep.subr.mxu0 0.0
        %1001 = vmatpush1.msra.mxu0 0.0
        %1002 = vmatprep.subr.mxu0 0.0
        %1003 = vmatpush1.msra.mxu0 0.0
        %1004 = vmatprep.subr.mxu0 0.0
        %1005 = vmatpush1.msra.mxu0 0.0
        %1006 = vmatprep.subr.mxu0 0.0
        %1007 = vmatpush1.msra.mxu0 0.0
        %1008 = vmatprep.subr.mxu0 0.0
        %1009 = vmatpush1.msra.mxu0 0.0
        %1010 = vmatprep.subr.mxu0 0.0
        %1011 = vmatpush1.msra.mxu0 0.0
        %1012 = vmatprep.subr.mxu0 0.0
        %1013 = vmatpush1.msra.mxu0 0.0
        %1014 = vmatprep.subr.mxu0 0.0
        %1015 = vmatpush1.msra.mxu0 0.0
        %1016 = vmatprep.subr.mxu0 0.0
        %1017 = vmatpush1.msra.mxu0 0.0
        %1018 = vmatprep.subr.mxu0 0.0
        %1019 = vmatpush1.msra.mxu0 0.0
        %1020 = vmatprep.subr.mxu0 0.0
        %1021 = vmatpush1.msra.mxu0 0.0
        %1022 = vmatprep.mubr.f32.mxu0 0.0
        %1023 = vmatmul.mubr.f32.gmra.mrb[0].mxu0 %v743
        %v1024 = vpop.f32.mrb[0].mxu0
        %v1025 = vadd.f32 %v739, %v1024
        %v1026 = vpop.f32.mrb[0].mxu0
        %v1027 = vadd.f32 %v739, %v1026
        %1028 = vdwg.mxu0
        %v1037 = vcombine.low %v812, %v814
        %v1038 = vcombine.low %v883, %v885
        %v1039 = vcombine.low %v954, %v956
        %v1040 = vcombine.low %v1025, %v1027
        %1045 = vst [vmem:[%s294] sm:$0xff] %v1037
        %1046 = vst [vmem:[%s294 + $0x8] sm:$0xff] %v1038
        %1047 = vst [vmem:[%s294 + $0x10] sm:$0xff] %v1039
        %1048 = vst [vmem:[%s294 + $0x18] sm:$0xff] %v1040
        %s1049 = sand.u32 %s142, 1
        %s1050 = scalar_lea.sflag [#allocation4], %s1049
        %s1051 = sand.u32 %s142, 1
        %s1052 = smul.addr %s1051, 32
        %s1053 = scalar_lea.vmem [#allocation11], %s1052
        // Predicated region
        $region61: #{tpu_custom_call.1} parent=39 // pred_check
          %p1054 = pneg %p152
        $region62: #{tpu_custom_call.1} parent=39 // pred_check_branch
          %1056 = sbr.rel (%p1054) target = $region64
        $region63: #{tpu_custom_call.1} parent=39 // pred_region
          %s1057 = smul.u32 8, %s24
          %s1059 = ssub.s32 512, 512
          %1060 = vsyncadd %s1050, %s1059
          %s1061 = smul.addr %s1057, 64
          %s1062 = scalar_lea.hbm %s5, %s1061
          %s1064 = sshll.u32 %s1053, 4
          %s1065 = int_to_ptr.vmem [resolvable:$true] %s1064
          %1067 = dma.vmem_to_hbm [thread:$0]  %s1065, 512, %s1062, %s1050
        $region64: #{tpu_custom_call.1} parent=39 // pred_fallthru
          _
      $region40: #{tpu_custom_call.1} parent=5 // pred_fallthru
        _
      %p1068 = scmp.le.s32.totalorder 2, %s19
      // Predicated region
      $region65: #{tpu_custom_call.1} parent=5 // pred_check
        %p1069 = pneg %p1068
      $region66: #{tpu_custom_call.1} parent=5 // pred_check_branch
        %1071 = sbr.rel (%p1069) target = $region68
      $region67: #{tpu_custom_call.1} parent=5 // pred_region
        %s1072 = ssub.s32 %s19, 2
        // Predicated region
        $region69: #{tpu_custom_call.1} parent=67 // pred_check
          %p1073 = pneg %p158
        $region70: #{tpu_custom_call.1} parent=67 // pred_check_branch
          %1075 = sbr.rel (%p1073) target = $region72
        $region71: #{tpu_custom_call.1} parent=67 // pred_region
          %s1076 = sand.u32 %s143, 1
          %s1077 = scalar_lea.sflag [#allocation4], %s1076
          %s1078 = sand.u32 %s143, 1
          %s1079 = smul.addr %s1078, 32
          %s1080 = scalar_lea.vmem [#allocation11], %s1079
          %1081 = dma.done %s1077, 512
        $region72: #{tpu_custom_call.1} parent=67 // pred_fallthru
          _
      $region68: #{tpu_custom_call.1} parent=5 // pred_fallthru
        _
    $region6: #{tpu_custom_call.1} parent=1 // loop_footer
      %s23 = sadd.s32 1, %s19
    $region7: #{tpu_custom_call.1} parent=1 // loop_footer_branch
      %18 = sbr.rel target = $region3
    $region8: #{tpu_custom_call.1} parent=1 // loop_exit
      _
    %1082 = vsyncpa [#allocation3], 1
    %s1083 = scalar_lea.sflag [#allocation3], 1
    %1084 = vsyncpa %s1083, 1
    %1085 = vsyncpa [#allocation6], 1
    %1086 = vsyncpa [#allocation9], 1
    %1087 = vsyncpa [#allocation4], 1
    %s1088 = scalar_lea.sflag [#allocation4], 1
    %1089 = vsyncpa %s1088, 1

</llo_original>
